<compile_context>
chip_gen: v7x
topology: tpu7x:2x2x1
jax: 0.10.0
libtpu: 0.0.40
codegen_flags: <defaults>
</compile_context>

<pallas_src>
import functools

import jax
import jax.numpy as jnp
from jax.experimental import pallas as pl
from jax.experimental.pallas import tpu as pltpu


def _asformer_criterion_kernel(pred_ref, labels_ref, mask_ref, out_ref,
                               ce_acc, nv_acc, mse_acc, prev_col,
                               *, mse_weight, seq_len):
    """One time-tile of the ASFormer loss.

    pred_ref  : (C, TB)  logits tile in native (class, time) layout (any float dtype)
    labels_ref: (1, TB)  int32 labels tile (ignore_index = -100)
    mask_ref  : (C, TB)  mask tile
    out_ref   : (1, 3)   [ce, mse, ce + mse], written on the last grid step
    ce_acc, nv_acc, mse_acc : (1, 1) f32 running sums (VMEM scratch)
    prev_col  : (C, 1)   f32 log-probs of the previous tile's last frame (carry)
    """
    k = pl.program_id(0)
    num_tiles = pl.num_programs(0)

    # Upcast inside the kernel; HBM traffic stays in the input's native dtype.
    logits = pred_ref[...].astype(jnp.float32)                    # (C, TB)
    num_classes, tb = logits.shape

    # Lane validity for the (possibly ragged) last tile.  Beyond seq_len the
    # DMA'd data is undefined, so force it finite before the softmax and zero
    # its contributions.
    ragged = (seq_len % tb) != 0                                  # static Python bool
    if ragged:
        lane = jax.lax.broadcasted_iota(jnp.int32, (1, tb), 1)
        in_range = (k * tb + lane) < seq_len                      # (1, TB) bool
        logits = jnp.where(in_range, logits, 0.0)

    # Numerically-stable log-softmax over the class (sublane) axis.
    m = jnp.max(logits, axis=0, keepdims=True)
    shifted = logits - m
    lse = jnp.log(jnp.sum(jnp.exp(shifted), axis=0, keepdims=True))
    log_probs = shifted - lse                                     # (C, TB) f32

    @pl.when(k == 0)
    def _init():
        ce_acc[...] = jnp.zeros_like(ce_acc)
        nv_acc[...] = jnp.zeros_like(nv_acc)
        mse_acc[...] = jnp.zeros_like(mse_acc)
        # Seed the carry with frame 0 itself so the nonexistent pair
        # "frame -1 -> frame 0" contributes exactly zero.
        prev_col[...] = log_probs[:, 0:1]

    # ---- CrossEntropyLoss(ignore_index=-100), mean over valid frames -------
    labels = labels_ref[...]                                      # (1, TB) int32
    valid = labels != -100
    if ragged:
        valid = jnp.logical_and(valid, in_range)
    valid_f = valid.astype(jnp.float32)                           # (1, TB)
    class_iota = jax.lax.broadcasted_iota(jnp.int32, (num_classes, tb), 0)
    one_hot = (class_iota == labels).astype(jnp.float32)          # (C, TB)
    ce_acc[...] += jnp.sum(log_probs * one_hot * valid_f, keepdims=True)
    nv_acc[...] += jnp.sum(valid_f, keepdims=True)

    # ---- truncated MSE between consecutive log-softmax frames --------------
    # prev_lp[:, t] = log_probs of frame (t - 1); the cross-tile boundary frame
    # comes from the carried column.  Built with a single concatenate (one lane
    # realignment, direction-unambiguous) instead of two off-by-one slices --
    # negligible either way on this HBM-bound loss.
    prev_lp = jnp.concatenate([prev_col[...], log_probs[:, :tb - 1]], axis=1)
    diff2 = jnp.clip((prev_lp - log_probs) ** 2, 0.0, 16.0)       # (C, TB)
    mask_vals = mask_ref[...].astype(jnp.float32)
    if ragged:
        mask_vals = jnp.where(in_range, mask_vals, 0.0)
    mse_acc[...] += jnp.sum(diff2 * mask_vals, keepdims=True)

    # Carry this tile's last frame for the next tile's boundary pair.
    prev_col[...] = log_probs[:, tb - 1:tb]

    @pl.when(k == num_tiles - 1)
    def _finalize():
        # NB: n_valid == 0 yields NaN, same as the PyTorch module.
        ce = -ce_acc[...] / nv_acc[...]                                     # (1, 1)
        mse = mse_acc[...] * (mse_weight / (num_classes * (seq_len - 1)))   # (1, 1)
        out_ref[...] = jnp.concatenate([ce, mse, ce + mse], axis=1)         # (1, 3)


def asformer_criterion(pred, labels, mask, *, mse_weight, time_tile=2048):
    """pred: (B, C, T) float; labels: (B, T) int; mask: (B, C, T) float.

    Matches ASFormerCriterion.forward (only batch element 0 is used).
    Returns (total, {"ce": ce, "mse": mse}).
    """
    _, c, t = pred.shape

    # The only host-side data movement: the tiny labels row as lane-dense (1, T).
    labels_row = labels[0].astype(jnp.int32).reshape(1, t)

    # Time tile: whole sequence if it fits, else a multiple of 128 lanes so
    # every tile is lane-dense; the ragged tail is masked in-kernel.
    time_tile = max(128, (int(time_tile) // 128) * 128)
    tb = t if t <= time_tile else time_tile
    num_tiles = pl.cdiv(t, tb)

    kernel = functools.partial(_asformer_criterion_kernel,
                               mse_weight=float(mse_weight), seq_len=t)

    out = pl.pallas_call(
        kernel,
        grid=(num_tiles,),
        in_specs=[
            pl.BlockSpec((None, c, tb), lambda k: (0, 0, k)),   # pred[0] tile (C, TB)
            pl.BlockSpec((1, tb), lambda k: (0, k)),            # labels row   (1, TB)
            pl.BlockSpec((None, c, tb), lambda k: (0, 0, k)),   # mask[0] tile (C, TB)
        ],
        out_specs=pl.BlockSpec((1, 3), lambda k: (0, 0)),
        out_shape=jax.ShapeDtypeStruct((1, 3), jnp.float32),
        scratch_shapes=[
            pltpu.VMEM((1, 1), jnp.float32),   # sum(log_prob[label] * valid)
            pltpu.VMEM((1, 1), jnp.float32),   # n_valid
            pltpu.VMEM((1, 1), jnp.float32),   # sum(clamp(diff^2, 0, 16) * mask)
            pltpu.VMEM((c, 1), jnp.float32),   # carried last-frame log-probs
        ],
        compiler_params=pltpu.CompilerParams(
            # Sequential accumulation + carried column across time tiles.
            dimension_semantics=("arbitrary",),
            vmem_limit_bytes=32 * 1024 * 1024,
        ),
    )(pred, labels_row, mask)

    ce = out[0, 0]
    mse = out[0, 1]
    total = out[0, 2]
    return total, {"ce": ce, "mse": mse}


def _reference(pred, labels, mask, mse_weight):
    """Pure-JAX reference of the PyTorch forward (for validation)."""
    p = jnp.transpose(pred, (0, 2, 1)).astype(jnp.float32)      # b t c
    lp = jax.nn.log_softmax(p[0], axis=1)                       # (T, C)
    lab = labels[0]
    valid = lab != -100
    picked = jnp.take_along_axis(lp, jnp.where(valid, lab, 0)[:, None], axis=1)[:, 0]
    valid_f = valid.astype(jnp.float32)
    ce = -jnp.sum(picked * valid_f) / jnp.sum(valid_f)
    prev = lp[:-1]
    nxt = lp[1:]
    mse_el = (prev - nxt) ** 2
    mse = mse_weight * jnp.mean(jnp.clip(mse_el.T, 0.0, 16.0) * mask[0, :, 1:])
    return ce + mse, ce, mse


if __name__ == "__main__":
    key = jax.random.PRNGKey(0)
    k1, k2 = jax.random.split(key)

    B, C, T = 2, 8, 300          # batch, num_classes, time
    MSE_WEIGHT = 0.15

    pred = jax.random.normal(k1, (B, C, T), dtype=jnp.float32)
    labels = jax.random.randint(k2, (B, T), 0, C, dtype=jnp.int32)
    # mark the last five frames as ignored to exercise ignore_index=-100
    labels = labels.at[:, -5:].set(-100)
    # mask: 1 for the first T-5 frames, 0 for padding, broadcast over classes
    frame_mask = (jnp.arange(T) < T - 5).astype(jnp.float32)
    mask = jnp.broadcast_to(frame_mask[None, None, :], (B, C, T))

    ref_total, ref_ce, ref_mse = _reference(pred, labels, mask, MSE_WEIGHT)

    # Path 1: whole sequence in one time tile.
    total1, parts1 = asformer_criterion(pred, labels, mask, mse_weight=MSE_WEIGHT)
    jax.block_until_ready(total1)
    assert jnp.allclose(total1, ref_total, rtol=1e-5, atol=1e-5)
    assert jnp.allclose(parts1["ce"], ref_ce, rtol=1e-5, atol=1e-5)
    assert jnp.allclose(parts1["mse"], ref_mse, rtol=1e-5, atol=1e-5)

    # Path 2: 128-frame tiles -> 3 grid steps with a ragged last tile,
    # exercising the carried boundary column and cross-tile accumulation.
    total2, parts2 = asformer_criterion(pred, labels, mask,
                                        mse_weight=MSE_WEIGHT, time_tile=128)
    jax.block_until_ready(total2)
    assert jnp.allclose(total2, ref_total, rtol=1e-5, atol=1e-5)
    assert jnp.allclose(parts2["ce"], ref_ce, rtol=1e-5, atol=1e-5)
    assert jnp.allclose(parts2["mse"], ref_mse, rtol=1e-5, atol=1e-5)

    print("KERNEL_OK")
</pallas_src>

<mosaic_0001>
module attributes {stable_mosaic.version = 11 : i64} {
  func.func @_asformer_criterion_kernel(%arg0: i32, %arg1: memref<1x8x300xf32, #tpu.memory_space<vmem>>, %arg2: memref<1x300xi32, #tpu.memory_space<vmem>>, %arg3: memref<1x8x300xf32, #tpu.memory_space<vmem>>, %arg4: memref<1x3xf32, #tpu.memory_space<vmem>>, %arg5: memref<1x1xf32, #tpu.memory_space<vmem>>, %arg6: memref<1x1xf32, #tpu.memory_space<vmem>>, %arg7: memref<1x1xf32, #tpu.memory_space<vmem>>, %arg8: memref<8x1xf32, #tpu.memory_space<vmem>>) attributes {dimension_semantics = [#tpu.dimension_semantics<arbitrary>], iteration_bounds = array<i64: 1>, scalar_prefetch = 0 : i64, scratch_operands = 4 : i64, tpu.core_type = #tpu.core_type<tc>, window_params = [{transform_indices = @transform_0, window_bounds = array<i64: 1, 8, 300>}, {transform_indices = @transform_1, window_bounds = array<i64: 1, 300>}, {transform_indices = @transform_2, window_bounds = array<i64: 1, 8, 300>}, {pipeline_mode = #tpu.pipeline_mode<synchronous>, transform_indices = @transform_3, window_bounds = array<i64: 1, 3>}]} {
    %c0 = arith.constant 0 : index
    %c0_0 = arith.constant 0 : index
    %c0_1 = arith.constant 0 : index
    %0 = vector.load %arg1[%c0, %c0_0, %c0_1] : memref<1x8x300xf32, #tpu.memory_space<vmem>>, vector<1x8x300xf32>
    %1 = vector.shape_cast %0 : vector<1x8x300xf32> to vector<8x300xf32>
    %cst = arith.constant dense<0xFF800000> : vector<300xf32>
    %2 = vector.multi_reduction <maximumf>, %1, %cst [0] : vector<8x300xf32> to vector<300xf32>
    %3 = vector.shape_cast %2 : vector<300xf32> to vector<1x300xf32>
    %4 = vector.broadcast %3 : vector<1x300xf32> to vector<8x300xf32>
    %5 = arith.subf %1, %4 : vector<8x300xf32>
    %6 = math.exp %5 : vector<8x300xf32>
    %cst_2 = arith.constant dense<0.000000e+00> : vector<300xf32>
    %7 = vector.multi_reduction <add>, %6, %cst_2 [0] : vector<8x300xf32> to vector<300xf32>
    %8 = vector.shape_cast %7 : vector<300xf32> to vector<1x300xf32>
    %9 = math.log %8 : vector<1x300xf32>
    %10 = vector.broadcast %9 : vector<1x300xf32> to vector<8x300xf32>
    %11 = arith.subf %5, %10 : vector<8x300xf32>
    %c0_i32 = arith.constant 0 : i32
    %12 = arith.cmpi eq, %arg0, %c0_i32 : i32
    %13 = arith.extui %12 : i1 to i32
    %c0_i32_3 = arith.constant 0 : i32
    %14 = arith.cmpi ne, %13, %c0_i32_3 : i32
    scf.if %14 {
      %cst_32 = arith.constant 0.000000e+00 : f32
      %69 = vector.broadcast %cst_32 : f32 to vector<1x1xf32>
      %c0_33 = arith.constant 0 : index
      %c0_34 = arith.constant 0 : index
      %70 = vector.load %arg5[%c0_33, %c0_34] : memref<1x1xf32, #tpu.memory_space<vmem>>, vector<1x1xf32>
      tpu.vector_store %arg5[%c0_33, %c0_34], %69 {strides = array<i32>} : memref<1x1xf32, #tpu.memory_space<vmem>>, vector<1x1xf32>,
      %cst_35 = arith.constant 0.000000e+00 : f32
      %71 = vector.broadcast %cst_35 : f32 to vector<1x1xf32>
      %c0_36 = arith.constant 0 : index
      %c0_37 = arith.constant 0 : index
      %72 = vector.load %arg6[%c0_36, %c0_37] : memref<1x1xf32, #tpu.memory_space<vmem>>, vector<1x1xf32>
      tpu.vector_store %arg6[%c0_36, %c0_37], %71 {strides = array<i32>} : memref<1x1xf32, #tpu.memory_space<vmem>>, vector<1x1xf32>,
      %cst_38 = arith.constant 0.000000e+00 : f32
      %73 = vector.broadcast %cst_38 : f32 to vector<1x1xf32>
      %c0_39 = arith.constant 0 : index
      %c0_40 = arith.constant 0 : index
      %74 = vector.load %arg7[%c0_39, %c0_40] : memref<1x1xf32, #tpu.memory_space<vmem>>, vector<1x1xf32>
      tpu.vector_store %arg7[%c0_39, %c0_40], %73 {strides = array<i32>} : memref<1x1xf32, #tpu.memory_space<vmem>>, vector<1x1xf32>,
      %75 = vector.extract_strided_slice %11 {offsets = [0, 0], sizes = [8, 1], strides = [1, 1]} : vector<8x300xf32> to vector<8x1xf32>
      %c0_41 = arith.constant 0 : index
      %c0_42 = arith.constant 0 : index
      %76 = vector.load %arg8[%c0_41, %c0_42] : memref<8x1xf32, #tpu.memory_space<vmem>>, vector<8x1xf32>
      tpu.vector_store %arg8[%c0_41, %c0_42], %75 {strides = array<i32>} : memref<8x1xf32, #tpu.memory_space<vmem>>, vector<8x1xf32>,
    } else {
    }
    %c0_4 = arith.constant 0 : index
    %c0_5 = arith.constant 0 : index
    %15 = vector.load %arg2[%c0_4, %c0_5] : memref<1x300xi32, #tpu.memory_space<vmem>>, vector<1x300xi32>
    %c-100_i32 = arith.constant -100 : i32
    %16 = vector.broadcast %c-100_i32 : i32 to vector<1x300xi32>
    %17 = arith.cmpi ne, %15, %16 : vector<1x300xi32>
    %18 = arith.extui %17 : vector<1x300xi1> to vector<1x300xi32>
    %19 = arith.sitofp %18 : vector<1x300xi32> to vector<1x300xf32>
    %20 = tpu.iota {dimensions = array<i32: 0>} : vector<8x300xi32>
    %21 = vector.broadcast %15 : vector<1x300xi32> to vector<8x300xi32>
    %22 = arith.cmpi eq, %20, %21 : vector<8x300xi32>
    %23 = arith.extui %22 : vector<8x300xi1> to vector<8x300xi32>
    %24 = arith.sitofp %23 : vector<8x300xi32> to vector<8x300xf32>
    %c0_6 = arith.constant 0 : index
    %c0_7 = arith.constant 0 : index
    %25 = vector.load %arg5[%c0_6, %c0_7] : memref<1x1xf32, #tpu.memory_space<vmem>>, vector<1x1xf32>
    %26 = arith.mulf %11, %24 : vector<8x300xf32>
    %27 = vector.broadcast %19 : vector<1x300xf32> to vector<8x300xf32>
    %28 = arith.mulf %26, %27 : vector<8x300xf32>
    %29 = vector.shape_cast %28 : vector<8x300xf32> to vector<1x8x300xf32>
    %cst_8 = arith.constant dense<0.000000e+00> : vector<1xf32>
    %30 = vector.multi_reduction <add>, %29, %cst_8 [1, 2] : vector<1x8x300xf32> to vector<1xf32>
    %31 = vector.shape_cast %30 : vector<1xf32> to vector<1x1x1xf32>
    %32 = vector.extract %31[0, 0, 0] : f32 from vector<1x1x1xf32>
    %33 = vector.broadcast %32 : f32 to vector<1x1xf32>
    %34 = arith.addf %25, %33 : vector<1x1xf32>
    %c0_9 = arith.constant 0 : index
    %c0_10 = arith.constant 0 : index
    %35 = vector.load %arg5[%c0_9, %c0_10] : memref<1x1xf32, #tpu.memory_space<vmem>>, vector<1x1xf32>
    tpu.vector_store %arg5[%c0_9, %c0_10], %34 {strides = array<i32>} : memref<1x1xf32, #tpu.memory_space<vmem>>, vector<1x1xf32>,
    %c0_11 = arith.constant 0 : index
    %c0_12 = arith.constant 0 : index
    %36 = vector.load %arg6[%c0_11, %c0_12] : memref<1x1xf32, #tpu.memory_space<vmem>>, vector<1x1xf32>
    %37 = vector.shape_cast %19 : vector<1x300xf32> to vector<1x1x300xf32>
    %cst_13 = arith.constant dense<0.000000e+00> : vector<1xf32>
    %38 = vector.multi_reduction <add>, %37, %cst_13 [1, 2] : vector<1x1x300xf32> to vector<1xf32>
    %39 = vector.shape_cast %38 : vector<1xf32> to vector<1x1x1xf32>
    %40 = vector.extract %39[0, 0, 0] : f32 from vector<1x1x1xf32>
    %41 = vector.broadcast %40 : f32 to vector<1x1xf32>
    %42 = arith.addf %36, %41 : vector<1x1xf32>
    %c0_14 = arith.constant 0 : index
    %c0_15 = arith.constant 0 : index
    %43 = vector.load %arg6[%c0_14, %c0_15] : memref<1x1xf32, #tpu.memory_space<vmem>>, vector<1x1xf32>
    tpu.vector_store %arg6[%c0_14, %c0_15], %42 {strides = array<i32>} : memref<1x1xf32, #tpu.memory_space<vmem>>, vector<1x1xf32>,
    %c0_16 = arith.constant 0 : index
    %c0_17 = arith.constant 0 : index
    %44 = vector.load %arg8[%c0_16, %c0_17] : memref<8x1xf32, #tpu.memory_space<vmem>>, vector<8x1xf32>
    %45 = vector.extract_strided_slice %11 {offsets = [0, 0], sizes = [8, 299], strides = [1, 1]} : vector<8x300xf32> to vector<8x299xf32>
    %46 = tpu.concatenate %44, %45 in 1 : vector<8x1xf32>, vector<8x299xf32> -> vector<8x300xf32>
    %47 = arith.subf %46, %11 : vector<8x300xf32>
    %48 = arith.mulf %47, %47 : vector<8x300xf32>
    %cst_18 = arith.constant 0.000000e+00 : f32
    %cst_19 = arith.constant 1.600000e+01 : f32
    %49 = vector.broadcast %cst_18 : f32 to vector<8x300xf32>
    %50 = arith.maximumf %49, %48 : vector<8x300xf32>
    %51 = vector.broadcast %cst_19 : f32 to vector<8x300xf32>
    %52 = arith.minimumf %51, %50 : vector<8x300xf32>
    %c0_20 = arith.constant 0 : index
    %c0_21 = arith.constant 0 : index
    %c0_22 = arith.constant 0 : index
    %53 = vector.load %arg3[%c0_20, %c0_21, %c0_22] : memref<1x8x300xf32, #tpu.memory_space<vmem>>, vector<1x8x300xf32>
    %54 = vector.shape_cast %53 : vector<1x8x300xf32> to vector<8x300xf32>
    %c0_23 = arith.constant 0 : index
    %c0_24 = arith.constant 0 : index
    %55 = vector.load %arg7[%c0_23, %c0_24] : memref<1x1xf32, #tpu.memory_space<vmem>>, vector<1x1xf32>
    %56 = arith.mulf %52, %54 : vector<8x300xf32>
    %57 = vector.shape_cast %56 : vector<8x300xf32> to vector<1x8x300xf32>
    %cst_25 = arith.constant dense<0.000000e+00> : vector<1xf32>
    %58 = vector.multi_reduction <add>, %57, %cst_25 [1, 2] : vector<1x8x300xf32> to vector<1xf32>
    %59 = vector.shape_cast %58 : vector<1xf32> to vector<1x1x1xf32>
    %60 = vector.extract %59[0, 0, 0] : f32 from vector<1x1x1xf32>
    %61 = vector.broadcast %60 : f32 to vector<1x1xf32>
    %62 = arith.addf %55, %61 : vector<1x1xf32>
    %c0_26 = arith.constant 0 : index
    %c0_27 = arith.constant 0 : index
    %63 = vector.load %arg7[%c0_26, %c0_27] : memref<1x1xf32, #tpu.memory_space<vmem>>, vector<1x1xf32>
    tpu.vector_store %arg7[%c0_26, %c0_27], %62 {strides = array<i32>} : memref<1x1xf32, #tpu.memory_space<vmem>>, vector<1x1xf32>,
    %64 = vector.extract_strided_slice %11 {offsets = [0, 299], sizes = [8, 1], strides = [1, 1]} : vector<8x300xf32> to vector<8x1xf32>
    %c0_28 = arith.constant 0 : index
    %c0_29 = arith.constant 0 : index
    %65 = vector.load %arg8[%c0_28, %c0_29] : memref<8x1xf32, #tpu.memory_space<vmem>>, vector<8x1xf32>
    tpu.vector_store %arg8[%c0_28, %c0_29], %64 {strides = array<i32>} : memref<8x1xf32, #tpu.memory_space<vmem>>, vector<8x1xf32>,
    %c0_i32_30 = arith.constant 0 : i32
    %66 = arith.cmpi eq, %arg0, %c0_i32_30 : i32
    %67 = arith.extui %66 : i1 to i32
    %c0_i32_31 = arith.constant 0 : i32
    %68 = arith.cmpi ne, %67, %c0_i32_31 : i32
    scf.if %68 {
      %c0_32 = arith.constant 0 : index
      %c0_33 = arith.constant 0 : index
      %69 = vector.load %arg5[%c0_32, %c0_33] : memref<1x1xf32, #tpu.memory_space<vmem>>, vector<1x1xf32>
      %cst_34 = arith.constant 0.000000e+00 : f32
      %70 = vector.broadcast %cst_34 : f32 to vector<1x1xf32>
      %71 = arith.subf %70, %69 : vector<1x1xf32>
      %c0_35 = arith.constant 0 : index
      %c0_36 = arith.constant 0 : index
      %72 = vector.load %arg6[%c0_35, %c0_36] : memref<1x1xf32, #tpu.memory_space<vmem>>, vector<1x1xf32>
      %73 = arith.divf %71, %72 : vector<1x1xf32>
      %c0_37 = arith.constant 0 : index
      %c0_38 = arith.constant 0 : index
      %74 = vector.load %arg7[%c0_37, %c0_38] : memref<1x1xf32, #tpu.memory_space<vmem>>, vector<1x1xf32>
      %cst_39 = arith.constant 6.27090267E-5 : f32
      %75 = vector.broadcast %cst_39 : f32 to vector<1x1xf32>
      %76 = arith.mulf %74, %75 : vector<1x1xf32>
      %77 = arith.addf %73, %76 : vector<1x1xf32>
      %78 = tpu.concatenate %73, %76, %77 in 1 : vector<1x1xf32>, vector<1x1xf32>, vector<1x1xf32> -> vector<1x3xf32>
      %c0_40 = arith.constant 0 : index
      %c0_41 = arith.constant 0 : index
      %79 = vector.load %arg4[%c0_40, %c0_41] : memref<1x3xf32, #tpu.memory_space<vmem>>, vector<1x3xf32>
      tpu.vector_store %arg4[%c0_40, %c0_41], %78 {strides = array<i32>} : memref<1x3xf32, #tpu.memory_space<vmem>>, vector<1x3xf32>,
    } else {
    }
    return
  }
  func.func @transform_0(%arg0: i32) -> (i32, i32, i32) {
    %c0_i32 = arith.constant 0 : i32
    %c0_i32_0 = arith.constant 0 : i32
    %c0_i32_1 = arith.constant 0 : i32
    return %c0_i32, %c0_i32_0, %arg0 : i32, i32, i32
  }
  func.func @transform_1(%arg0: i32) -> (i32, i32) {
    %c0_i32 = arith.constant 0 : i32
    %c0_i32_0 = arith.constant 0 : i32
    return %c0_i32, %arg0 : i32, i32
  }
  func.func @transform_2(%arg0: i32) -> (i32, i32, i32) {
    %c0_i32 = arith.constant 0 : i32
    %c0_i32_0 = arith.constant 0 : i32
    %c0_i32_1 = arith.constant 0 : i32
    return %c0_i32, %c0_i32_0, %arg0 : i32, i32, i32
  }
  func.func @transform_3(%arg0: i32) -> (i32, i32) {
    %c0_i32 = arith.constant 0 : i32
    %c0_i32_0 = arith.constant 0 : i32
    %c0_i32_1 = arith.constant 0 : i32
    return %c0_i32, %c0_i32_0 : i32, i32
  }
}

</mosaic_0001>

<llo_original>
// kernel: tpu_custom_call.1
$region0: #{tpu_custom_call.1}
  #allocation0 [shape = 'u32[]', space=smem, size = 0x4, offset = 0x4, fixed_abs, tag = 'smem constant byte address 0x4 - core index']
  #allocation1 [shape = 'u32[144,128]{1,0:T(1,128)}', space=vmem, size = 0x12000, scoped, tag = 'internal scratch']
  #allocation2 [shape = 'f32[1,1]{1,0:T(1,128)}', space=vmem, size = 0x200, scoped, tag = 'scratch operand']
  #allocation3 [shape = 'f32[1,1]{1,0:T(1,128)}', space=vmem, size = 0x200, scoped, tag = 'scratch operand']
  #allocation4 [shape = 'f32[1,1]{1,0:T(1,128)}', space=vmem, size = 0x200, scoped, tag = 'scratch operand']
  #allocation5 [shape = 'f32[8,1]{1,0:T(8,128)}', space=vmem, size = 0x1000, scoped, tag = 'scratch operand']
  %s0 = inlined_call_operand.hbm [shape: f32[2,8,300], index: 0, kind: input, shape index: {}]
  %s1 = inlined_call_operand.vmem [shape: s32[1,300], index: 1, kind: input, shape index: {}]
  %s2 = inlined_call_operand.hbm [shape: f32[2,8,300], index: 2, kind: input, shape index: {}]
  %s3 = inlined_call_operand.hbm [shape: f32[1,3], index: 3, kind: output, shape index: {}]
  %s4 = sld [smem:[#allocation0]]
  $region38: #{tpu_custom_call.1} parent=0
    _
  %s6 = ssub.s32 1, %s4
  %s7 = scalar_select 0, %s6, %s4
  $region1: #{tpu_custom_call.1} parent=0
    #allocation6 [shape = 'u8[12288]{0}', space=vmem, size = 0x3000, scoped, tag = 'input window, operand 0, single buffered']
    #allocation7 [shape = 's32[1]{0}', space=sflag, size = 0x4, scoped, tag = 'scoped memory for tpu_custom_call.1']
    #allocation8 [shape = 's32[1]{0}', space=sflag, size = 0x4, scoped, tag = 'scoped memory for tpu_custom_call.1']
    #allocation9 [shape = 'u8[12288]{0}', space=vmem, size = 0x3000, scoped, tag = 'input window, operand 2, single buffered']
    #allocation10 [shape = 's32[1]{0}', space=sflag, size = 0x4, scoped, tag = 'scoped memory for tpu_custom_call.1']
    #allocation11 [shape = 'u8[512]{0}', space=vmem, size = 0x400, scoped, tag = 'output window, operand 0, single buffered']
    %8 = vsyncpa [#allocation7], 0
    %9 = vsyncpa [#allocation10], 0
    %10 = vsyncpa [#allocation8], 0
    // Predicated region
    $region2: #{tpu_custom_call.1} parent=1 // pred_check
      _
    $region3: #{tpu_custom_call.1} parent=1 // pred_check_branch
      %12 = sbr.rel (0) target = $region5
    $region4: #{tpu_custom_call.1} parent=1 // pred_region
      %s14 = ssub.s32 384, 384
      %15 = vsyncadd [#allocation7], %s14
      %s17 = sshll.u32 [#allocation6], 4
      %s18 = int_to_ptr.vmem [resolvable:$true] %s17
      %20 = dma.hbm_to_vmem [thread:$0]  %s0, 384, %s18, [#allocation7]
    $region5: #{tpu_custom_call.1} parent=1 // pred_fallthru
      _
    // Predicated region
    $region6: #{tpu_custom_call.1} parent=1 // pred_check
      _
    $region7: #{tpu_custom_call.1} parent=1 // pred_check_branch
      %22 = sbr.rel (0) target = $region9
    $region8: #{tpu_custom_call.1} parent=1 // pred_region
      _
    $region9: #{tpu_custom_call.1} parent=1 // pred_fallthru
      _
    // Predicated region
    $region10: #{tpu_custom_call.1} parent=1 // pred_check
      _
    $region11: #{tpu_custom_call.1} parent=1 // pred_check_branch
      %24 = sbr.rel (0) target = $region13
    $region12: #{tpu_custom_call.1} parent=1 // pred_region
      %s26 = ssub.s32 384, 384
      %27 = vsyncadd [#allocation10], %s26
      %s29 = sshll.u32 [#allocation9], 4
      %s30 = int_to_ptr.vmem [resolvable:$true] %s29
      %32 = dma.hbm_to_vmem [thread:$0]  %s2, 384, %s30, [#allocation10]
    $region13: #{tpu_custom_call.1} parent=1 // pred_fallthru
      _
    // Predicated region
    $region14: #{tpu_custom_call.1} parent=1 // pred_check
      _
    $region15: #{tpu_custom_call.1} parent=1 // pred_check_branch
      %34 = sbr.rel (0) target = $region17
    $region16: #{tpu_custom_call.1} parent=1 // pred_region
      %35 = dma.done [#allocation7], 384
    $region17: #{tpu_custom_call.1} parent=1 // pred_fallthru
      _
    // Predicated region
    $region18: #{tpu_custom_call.1} parent=1 // pred_check
      _
    $region19: #{tpu_custom_call.1} parent=1 // pred_check_branch
      %37 = sbr.rel (0) target = $region21
    $region20: #{tpu_custom_call.1} parent=1 // pred_region
      %38 = dma.done [#allocation10], 384
    $region21: #{tpu_custom_call.1} parent=1 // pred_fallthru
      _
    %v39 = vld [vmem:[#allocation6] sm:$0xff]
    %v40 = vld [vmem:[#allocation6 + $0x8] sm:$0xff]
    %v41 = vld [vmem:[#allocation6 + $0x10] sm:$0xff]
    %v42 = vrot.slane %v39, 4
    %v43 = vmax.f32 %v39, %v42
    %v44 = vrot.slane %v43, 2
    %v45 = vmax.f32 %v43, %v44
    %v46 = vrot.slane %v45, 1
    %v47 = vmax.f32 %v45, %v46
    %v48 = vrot.slane %v40, 4
    %v49 = vmax.f32 %v40, %v48
    %v50 = vrot.slane %v49, 2
    %v51 = vmax.f32 %v49, %v50
    %v52 = vrot.slane %v51, 1
    %v53 = vmax.f32 %v51, %v52
    %vm54 = vcmask 359424
    %v55 = vsel %vm54, %v41, -inf
    %v56 = vrot.slane %v55, 4
    %v57 = vmax.f32 %v55, %v56
    %v58 = vrot.slane %v57, 2
    %v59 = vmax.f32 %v57, %v58
    %v60 = vrot.slane %v59, 1
    %v61 = vmax.f32 %v59, %v60
    %v62 = vsub.f32 %v39, %v47
    %v63 = vsub.f32 %v40, %v53
    %v64 = vsub.f32 %v41, %v61
    %v65 = vmul.f32 %v62, 1.442695
    %v66 = vpow.pop %v65
    %v67 = vmul.f32 %v63, 1.442695
    %v68 = vpow.pop %v67
    %v69 = vmul.f32 %v64, 1.442695
    %v70 = vpow.pop %v69
    %v71 = vrot.slane %v66, 4
    %v72 = vadd.f32 %v66, %v71
    %v73 = vrot.slane %v72, 2
    %v74 = vadd.f32 %v72, %v73
    %v75 = vrot.slane %v74, 1
    %v76 = vadd.f32 %v74, %v75
    %v77 = vrot.slane %v68, 4
    %v78 = vadd.f32 %v68, %v77
    %v79 = vrot.slane %v78, 2
    %v80 = vadd.f32 %v78, %v79
    %v81 = vrot.slane %v80, 1
    %v82 = vadd.f32 %v80, %v81
    %v83 = vsel %vm54, %v70, 0.0
    %v84 = vrot.slane %v83, 4
    %v85 = vadd.f32 %v83, %v84
    %v86 = vrot.slane %v85, 2
    %v87 = vadd.f32 %v85, %v86
    %v88 = vrot.slane %v87, 1
    %v89 = vadd.f32 %v87, %v88
    %v90 = vlog2.pop %v76
    %v91 = vmul.f32 %v90, 0.6931472
    %v92 = vlog2.pop %v82
    %v93 = vmul.f32 %v92, 0.6931472
    %v94 = vlog2.pop %v89
    %v95 = vmul.f32 %v94, 0.6931472
    %v96 = vsub.f32 %v62, %v91
    %v97 = vsub.f32 %v63, %v93
    %v98 = vsub.f32 %v64, %v95
    %p99 = scmp.eq.s32.totalorder 0, 0
    // Predicated region
    $region22: #{tpu_custom_call.1} parent=1 // pred_check
      %p100 = pneg %p99
    $region23: #{tpu_custom_call.1} parent=1 // pred_check_branch
      %102 = sbr.rel (%p100) target = $region25
    $region24: #{tpu_custom_call.1} parent=1 // pred_region
      %vm103 = vcmask 0
      %104 = vst.msk [vmem:[#allocation2] sm:$0x1] %vm103, 0.0
      %105 = vst.msk [vmem:[#allocation3] sm:$0x1] %vm103, 0.0
      %106 = vst.msk [vmem:[#allocation4] sm:$0x1] %vm103, 0.0
      %vm107 = vcmask 7168
      %108 = vst.msk [vmem:[#allocation5] sm:$0xff] %vm107, %v96
    $region25: #{tpu_custom_call.1} parent=1 // pred_fallthru
      _
    %v109 = vld [vmem:[%s1] sm:$0x7]
    %vm110 = vcmp.ne.s32.totalorder %v109, 4294967196
    %v111 = vsel %vm110, 1, 0
    %v112 = vcvt.s32.f32 %v111
    %v113 = vlaneseq
    %v114 = vshrl.u32 %v113, 7
    %v115 = vlaneseq
    %v116 = vshrl.u32 %v115, 7
    %v117 = vsub.s32 0, %v116
    %v118 = vrot.slane %v109, %v117
    %v119 = vlaneseq
    %v120 = vshrl.u32 %v119, 7
    %v121 = vsub.s32 1, %v120
    %v122 = vrot.slane %v109, %v121
    %v123 = vlaneseq
    %v124 = vshrl.u32 %v123, 7
    %v125 = vsub.s32 2, %v124
    %v126 = vrot.slane %v109, %v125
    %vm127 = vcmp.eq.s32.totalorder %v114, %v118
    %vm128 = vcmp.eq.s32.totalorder %v114, %v122
    %vm129 = vcmp.eq.s32.totalorder %v114, %v126
    %v130 = vsel %vm127, 1, 0
    %v131 = vsel %vm128, 1, 0
    %v132 = vsel %vm129, 1, 0
    %v133 = vcvt.s32.f32 %v130
    %v134 = vcvt.s32.f32 %v131
    %v135 = vcvt.s32.f32 %v132
    %v136 = vld [vmem:[#allocation2] sm:$0x1]
    %v137 = vmul.f32 %v96, %v133
    %v138 = vmul.f32 %v97, %v134
    %v139 = vmul.f32 %v98, %v135
    %v141 = vlaneseq
    %v142 = vshrl.u32 %v141, 7
    %v143 = vsub.s32 0, %v142
    %v144 = vrot.slane %v112, %v143
    %v145 = vlaneseq
    %v146 = vshrl.u32 %v145, 7
    %v147 = vsub.s32 1, %v146
    %v148 = vrot.slane %v112, %v147
    %v149 = vlaneseq
    %v150 = vshrl.u32 %v149, 7
    %v151 = vsub.s32 2, %v150
    %v152 = vrot.slane %v112, %v151
    %v156 = vmul.f32 %v137, %v144
    %v157 = vmul.f32 %v138, %v148
    %v158 = vmul.f32 %v139, %v152
    %v159 = vadd.f32 %v156, %v157
    %v160 = vsel %vm54, %v158, 0.0
    %v161 = vadd.f32 %v159, %v160
    %162 = vadd.xlane.f32.xlu0 %v161
    %v163 = vpop.xlane.xlu0 %162
    %v164 = vrot.slane %v163, 4
    %v165 = vadd.f32 %v163, %v164
    %v166 = vrot.slane %v165, 2
    %v167 = vadd.f32 %v165, %v166
    %v168 = vrot.slane %v167, 1
    %v169 = vadd.f32 %v167, %v168
    %s170 = vtos %v169
    %v171 = vstv %s170
    %v172 = vadd.f32 %v136, %v171
    %vm173 = vcmask 0
    %174 = vst.msk [vmem:[#allocation2] sm:$0x1] %vm173, %v172
    %v175 = vld [vmem:[#allocation3] sm:$0x1]
    %vm176 = vcmask 1040384
    %v177 = vsel %vm176, %v144, 0.0
    %v178 = vsel %vm176, %v148, 0.0
    %v179 = vadd.f32 %v177, %v178
    %vm180 = vcmask 352256
    %v181 = vsel %vm180, %v152, 0.0
    %v182 = vadd.f32 %v179, %v181
    %183 = vadd.xlane.f32.xlu0 %v182
    %v184 = vpop.xlane.xlu0 %183
    %v185 = vrot.slane %v184, 4
    %v186 = vadd.f32 %v184, %v185
    %v187 = vrot.slane %v186, 2
    %v188 = vadd.f32 %v186, %v187
    %v189 = vrot.slane %v188, 1
    %v190 = vadd.f32 %v188, %v189
    %s191 = vtos %v190
    %v192 = vstv %s191
    %v193 = vadd.f32 %v175, %v192
    %194 = vst.msk [vmem:[#allocation3] sm:$0x1] %vm173, %v193
    %v195 = vld [vmem:[#allocation5] sm:$0xff]
    %199 = vrot.lane.b32.xlu0 %v96, 1
    %v200 = vpop.permute.xlu0 %199
    %201 = vrot.lane.b32.xlu0 %v97, 1
    %v202 = vpop.permute.xlu0 %201
    %203 = vrot.lane.b32.xlu0 %v98, 1
    %v204 = vpop.permute.xlu0 %203
    %vm205 = vcmask 7168
    %v206 = vsel %vm205, %v200, %v202
    %v207 = vsel %vm205, %v202, %v204
    %v211 = vsel %vm205, %v195, %v200
    %v212 = vsub.f32 %v211, %v96
    %v213 = vsub.f32 %v206, %v97
    %v214 = vsub.f32 %v207, %v98
    %v215 = vmul.f32 %v212, %v212
    %v216 = vmul.f32 %v213, %v213
    %v217 = vmul.f32 %v214, %v214
    %v218 = vmax.f32 %v215, 0.0
    %v219 = vmax.f32 %v216, 0.0
    %v220 = vmax.f32 %v217, 0.0
    %v221 = vmin.f32 %v218, 16.0
    %v222 = vmin.f32 %v219, 16.0
    %v223 = vmin.f32 %v220, 16.0
    %v224 = vld [vmem:[#allocation9] sm:$0xff]
    %v225 = vld [vmem:[#allocation9 + $0x8] sm:$0xff]
    %v226 = vld [vmem:[#allocation9 + $0x10] sm:$0xff]
    %v227 = vld [vmem:[#allocation4] sm:$0x1]
    %v228 = vmul.f32 %v221, %v224
    %v229 = vmul.f32 %v222, %v225
    %v230 = vmul.f32 %v223, %v226
    %v231 = vadd.f32 %v228, %v229
    %v232 = vsel %vm54, %v230, 0.0
    %v233 = vadd.f32 %v231, %v232
    %234 = vadd.xlane.f32.xlu0 %v233
    %v235 = vpop.xlane.xlu0 %234
    %v236 = vrot.slane %v235, 4
    %v237 = vadd.f32 %v235, %v236
    %v238 = vrot.slane %v237, 2
    %v239 = vadd.f32 %v237, %v238
    %v240 = vrot.slane %v239, 1
    %v241 = vadd.f32 %v239, %v240
    %s242 = vtos %v241
    %v243 = vstv %s242
    %v244 = vadd.f32 %v227, %v243
    %245 = vst.msk [vmem:[#allocation4] sm:$0x1] %vm173, %v244
    %246 = vrot.lane.b32.xlu0 %v98, 85
    %v247 = vpop.permute.xlu0 %246
    %249 = vst.msk [vmem:[#allocation5] sm:$0xff] %vm205, %v247
    // Predicated region
    $region26: #{tpu_custom_call.1} parent=1 // pred_check
      %p250 = pneg %p99
    $region27: #{tpu_custom_call.1} parent=1 // pred_check_branch
      %252 = sbr.rel (%p250) target = $region29
    $region28: #{tpu_custom_call.1} parent=1 // pred_region
      %v253 = vld [vmem:[#allocation2] sm:$0x1]
      %v254 = vsub.f32 0.0, %v253
      %v255 = vld [vmem:[#allocation3] sm:$0x1]
      %v256 = vrcp.pop %v255
      %v257 = vmul.f32 %v254, %v256
      %v258 = vld [vmem:[#allocation4] sm:$0x1]
      %v259 = vmul.f32 %v258, 6.270903e-05
      %v260 = vadd.f32 %v257, %v259
      %v262 = vlaneseq
      %v263 = vshrl.u32 %v262, 7
      %v264 = vsub.s32 0, %v263
      %v265 = vrot.slane %v259, %v264
      %266 = vrot.lane.b32.xlu0 %v265, 1
      %v267 = vpop.permute.xlu0 %266
      %v270 = vlaneseq
      %v271 = vshrl.u32 %v270, 7
      %v272 = vsub.s32 0, %v271
      %v273 = vrot.slane %v260, %v272
      %274 = vrot.lane.b32.xlu0 %v273, 2
      %v275 = vpop.permute.xlu0 %274
      %v277 = vsel %vm205, %v257, %v267
      %vm278 = vcmask 15360
      %v279 = vsel %vm278, %v277, %v275
      %vm280 = vcmask 16384
      %281 = vst.msk [vmem:[#allocation11] sm:$0x1] %vm280, %v279
    $region29: #{tpu_custom_call.1} parent=1 // pred_fallthru
      _
    // Predicated region
    $region30: #{tpu_custom_call.1} parent=1 // pred_check
      _
    $region31: #{tpu_custom_call.1} parent=1 // pred_check_branch
      %283 = sbr.rel (0) target = $region33
    $region32: #{tpu_custom_call.1} parent=1 // pred_region
      %s285 = ssub.s32 16, 16
      %286 = vsyncadd [#allocation8], %s285
      %s288 = sshll.u32 [#allocation11], 4
      %s289 = int_to_ptr.vmem [resolvable:$true] %s288
      %291 = dma.vmem_to_hbm [thread:$0]  %s289, 16, %s3, [#allocation8]
    $region33: #{tpu_custom_call.1} parent=1 // pred_fallthru
      _
    // Predicated region
    $region34: #{tpu_custom_call.1} parent=1 // pred_check
      _
    $region35: #{tpu_custom_call.1} parent=1 // pred_check_branch
      %293 = sbr.rel (0) target = $region37
    $region36: #{tpu_custom_call.1} parent=1 // pred_region
      %294 = dma.done [#allocation8], 16
    $region37: #{tpu_custom_call.1} parent=1 // pred_fallthru
      _
    %295 = vsyncpa [#allocation7], 1
    %296 = vsyncpa [#allocation10], 1
    %297 = vsyncpa [#allocation8], 1

</llo_original>
